<compile_context>
chip_gen: v6e
topology: v6e:2x2x1
jax: 0.10.0
libtpu: 0.0.40
codegen_flags: <defaults>
</compile_context>

<pallas_src>
import functools

import jax
import jax.numpy as jnp
from jax import lax
from jax.experimental import pallas as pl
from jax.experimental.pallas import tpu as pltpu


def _in_kernel(x_ref, gb_ref, o_ref, stats_ref, *, eps):
    # x_ref:     (TR, HW)  tile of (n, c) rows, full spatial extent per row
    # gb_ref:    (TR, 2)   per-row [gamma, beta] tile (f32)
    # o_ref:     (TR, HW)  normalized output tile
    # stats_ref: (TR, 2)   per-row [mean, var] (f32) for the EMA glue
    gamma = gb_ref[:, 0:1]                                    # (TR, 1)
    beta = gb_ref[:, 1:2]                                     # (TR, 1)

    x = x_ref[...].astype(jnp.float32)                        # (TR, HW)
    mean = jnp.mean(x, axis=-1, keepdims=True)                # (TR, 1)
    xc = x - mean                                             # reused below
    # biased variance, matches torch.mean((x - mean)**2, ...)
    var = jnp.mean(xc * xc, axis=-1, keepdims=True)           # (TR, 1)

    scale = lax.rsqrt(var + eps) * gamma                      # fold gamma in
    o_ref[...] = (xc * scale + beta).astype(o_ref.dtype)
    stats_ref[:, 0:1] = mean
    stats_ref[:, 1:2] = var


def _choose_tiling(rows, hw, itemsize, *, block_budget_bytes=8 << 20):
    """Pick (tile_rows, padded_rows).

    tile_rows is a multiple of the dtype's sublane quantum and keeps one
    (tile, hw) block within the byte budget (double-buffered x-in + y-out is
    ~4x the block).  rows is padded up to steps * tile_rows so an exact grid
    always exists (pad rows are discarded by the wrapper).  Step counts > 1
    are nudged to even values so v7x's 2 TensorCores split the "parallel"
    axis evenly; a 1 -> 2 split is only taken when it costs no extra padding
    and the per-core block stays >= ~1 MiB (on single-TC v5e/v6e an extra
    step is only ~0.35 us).
    """
    sub = {4: 8, 2: 16, 1: 32}.get(itemsize, 8)
    rows_up = -(-rows // sub) * sub                 # rows rounded up to quantum
    row_bytes = max(1, hw * itemsize)

    cap = block_budget_bytes // row_bytes
    cap = max(sub, (cap // sub) * sub)              # round down to quantum

    steps = max(1, -(-rows_up // cap))              # min steps within budget
    if steps == 1:
        half_bytes = (rows_up // 2) * row_bytes
        if (rows_up % (2 * sub) == 0 and rows_up // 2 >= sub
                and half_bytes >= (1 << 20)):
            steps = 2                               # free, balanced v7x split
    elif steps % 2 == 1:
        steps += 1                                  # even split for 2 TCs

    tile = -(-rows_up // steps)
    tile = -(-tile // sub) * sub                    # round up to quantum
    return tile, steps * tile


def instance_norm_forward(x, gamma, beta, moving_mean, moving_var,
                          *, eps=1e-5, mom=0.9, block_budget_bytes=8 << 20):
    """Training-mode forward of the IN module.

    x:            (N, C, H, W)
    gamma, beta:  (1, C, 1, 1)
    moving_mean:  (N, C, 1, 1, 1)   (G == C, C // G == 1)
    moving_var:   (N, C, 1, 1, 1)

    Returns (out, new_moving_mean, new_moving_var).
    """
    N, C, H, W = x.shape
    rows = N * C
    hw = H * W

    x2 = x.reshape(rows, hw)
    itemsize = x2.dtype.itemsize
    tile, rows_p = _choose_tiling(rows, hw, itemsize,
                                  block_budget_bytes=block_budget_bytes)

    # Per-row [gamma, beta]; rows are ordered (n, c).  broadcast_to fuses (no
    # HBM tile materialization); the fused (rows, 2) array is streamed
    # per-step alongside x (NOT kept whole-array resident in VMEM).
    g_rows = jnp.broadcast_to(gamma.reshape(1, C), (N, C)).reshape(rows, 1)
    b_rows = jnp.broadcast_to(beta.reshape(1, C), (N, C)).reshape(rows, 1)
    gb_rows = jnp.concatenate([g_rows, b_rows], axis=-1).astype(jnp.float32)

    if rows_p != rows:
        pad = rows_p - rows
        x2 = jnp.pad(x2, ((0, pad), (0, 0)))
        gb_rows = jnp.pad(gb_rows, ((0, pad), (0, 0)))

    grid = (rows_p // tile,)
    kernel = functools.partial(_in_kernel, eps=eps)

    out2, stats = pl.pallas_call(
        kernel,
        out_shape=(
            jax.ShapeDtypeStruct((rows_p, hw), x.dtype),
            jax.ShapeDtypeStruct((rows_p, 2), jnp.float32),
        ),
        grid_spec=pltpu.PrefetchScalarGridSpec(
            num_scalar_prefetch=0,
            grid=grid,
            in_specs=[
                pl.BlockSpec((tile, hw), lambda i: (i, 0)),
                pl.BlockSpec((tile, 2), lambda i: (i, 0)),
            ],
            out_specs=[
                pl.BlockSpec((tile, hw), lambda i: (i, 0)),
                pl.BlockSpec((tile, 2), lambda i: (i, 0)),
            ],
        ),
        compiler_params=pltpu.CompilerParams(
            dimension_semantics=("parallel",),
            vmem_limit_bytes=48 << 20,
        ),
        cost_estimate=pl.CostEstimate(
            flops=int(5 * rows_p * hw),
            transcendentals=int(rows_p),
            bytes_accessed=int(2 * rows_p * hw * itemsize + 16 * rows_p),
        ),
    )(x2, gb_rows)

    out = out2[:rows].reshape(N, C, H, W)

    # no-grad EMA update of the moving statistics (plain-JAX glue)
    xmean = stats[:rows, 0].reshape(N, C, 1, 1, 1)
    xvar = stats[:rows, 1].reshape(N, C, 1, 1, 1)
    new_moving_mean = mom * moving_mean + (1.0 - mom) * xmean
    new_moving_var = mom * moving_var + (1.0 - mom) * xvar

    return out, new_moving_mean, new_moving_var


def _reference(x, gamma, beta, eps=1e-5):
    N, C, H, W = x.shape
    xv = x.reshape(N, C, 1, H, W).astype(jnp.float32)
    m = jnp.mean(xv, axis=(2, 3, 4), keepdims=True)
    v = jnp.mean((xv - m) ** 2, axis=(2, 3, 4), keepdims=True)
    y = ((xv - m) / jnp.sqrt(v + eps)).reshape(N, C, H, W)
    return y * gamma + beta, m, v


def _run_case(key, N, C, H, W, eps=1e-5, mom=0.9):
    x = jax.random.normal(key, (N, C, H, W), dtype=jnp.float32)
    gamma = jnp.ones((1, C, 1, 1), dtype=jnp.float32)
    beta = jnp.zeros((1, C, 1, 1), dtype=jnp.float32)
    moving_mean = jnp.zeros((N, C, 1, 1, 1), dtype=jnp.float32)
    moving_var = jnp.ones((N, C, 1, 1, 1), dtype=jnp.float32)

    out, mm, mv = instance_norm_forward(
        x, gamma, beta, moving_mean, moving_var, eps=eps, mom=mom)
    out = jax.block_until_ready(out)
    mm = jax.block_until_ready(mm)
    mv = jax.block_until_ready(mv)

    ref_out, ref_m, ref_v = _reference(x, gamma, beta, eps=eps)
    ref_mm = mom * moving_mean + (1.0 - mom) * ref_m.reshape(N, C, 1, 1, 1)
    ref_mv = mom * moving_var + (1.0 - mom) * ref_v.reshape(N, C, 1, 1, 1)

    assert jnp.allclose(out, ref_out, atol=1e-4, rtol=1e-4), "output mismatch"
    assert jnp.allclose(mm, ref_mm, atol=1e-5, rtol=1e-5), "moving_mean mismatch"
    assert jnp.allclose(mv, ref_mv, atol=1e-5, rtol=1e-5), "moving_var mismatch"


if __name__ == "__main__":
    key = jax.random.PRNGKey(0)
    k1, k2, k3 = jax.random.split(key, 3)

    # small shape consistent with the module (G = C, C // G = 1)
    _run_case(k1, N=2, C=4, H=16, W=16)
    # larger case: exercises the streamed per-step gamma/beta tile
    _run_case(k2, N=8, C=16, H=16, W=16)
    # awkward N*C (15 rows): exercises the row-padding path
    _run_case(k3, N=3, C=5, H=16, W=16)

    print("KERNEL_OK")
</pallas_src>

<mosaic_0001>
module attributes {stable_mosaic.version = 11 : i64} {
  func.func @_in_kernel(%arg0: i32, %arg1: memref<8x256xf32, #tpu.memory_space<vmem>>, %arg2: memref<8x2xf32, #tpu.memory_space<vmem>>, %arg3: memref<8x256xf32, #tpu.memory_space<vmem>>, %arg4: memref<8x2xf32, #tpu.memory_space<vmem>>) attributes {dimension_semantics = [#tpu.dimension_semantics<parallel>], iteration_bounds = array<i64: 1>, scalar_prefetch = 0 : i64, scratch_operands = 0 : i64, tpu.core_type = #tpu.core_type<tc>, window_params = [{transform_indices = @transform_0, window_bounds = array<i64: 8, 256>}, {transform_indices = @transform_1, window_bounds = array<i64: 8, 2>}, {transform_indices = @transform_2, window_bounds = array<i64: 8, 256>}, {transform_indices = @transform_3, window_bounds = array<i64: 8, 2>}]} {
    %c0 = arith.constant 0 : index
    %c0_0 = arith.constant 0 : index
    %0 = vector.load %arg2[%c0, %c0_0] : memref<8x2xf32, #tpu.memory_space<vmem>>, vector<8x1xf32>
    %c0_1 = arith.constant 0 : index
    %c1 = arith.constant 1 : index
    %1 = vector.load %arg2[%c0_1, %c1] : memref<8x2xf32, #tpu.memory_space<vmem>>, vector<8x1xf32>
    %c0_2 = arith.constant 0 : index
    %c0_3 = arith.constant 0 : index
    %2 = vector.load %arg1[%c0_2, %c0_3] : memref<8x256xf32, #tpu.memory_space<vmem>>, vector<8x256xf32>
    %cst = arith.constant dense<0.000000e+00> : vector<8xf32>
    %3 = vector.multi_reduction <add>, %2, %cst [1] : vector<8x256xf32> to vector<8xf32>
    %4 = vector.shape_cast %3 : vector<8xf32> to vector<8x1xf32>
    %cst_4 = arith.constant 2.560000e+02 : f32
    %5 = vector.broadcast %cst_4 : f32 to vector<8x1xf32>
    %6 = arith.divf %4, %5 : vector<8x1xf32>
    %7 = vector.broadcast %6 : vector<8x1xf32> to vector<8x256xf32>
    %8 = arith.subf %2, %7 : vector<8x256xf32>
    %9 = arith.mulf %8, %8 : vector<8x256xf32>
    %cst_5 = arith.constant dense<0.000000e+00> : vector<8xf32>
    %10 = vector.multi_reduction <add>, %9, %cst_5 [1] : vector<8x256xf32> to vector<8xf32>
    %11 = vector.shape_cast %10 : vector<8xf32> to vector<8x1xf32>
    %cst_6 = arith.constant 2.560000e+02 : f32
    %12 = vector.broadcast %cst_6 : f32 to vector<8x1xf32>
    %13 = arith.divf %11, %12 : vector<8x1xf32>
    %cst_7 = arith.constant 9.99999974E-6 : f32
    %14 = vector.broadcast %cst_7 : f32 to vector<8x1xf32>
    %15 = arith.addf %13, %14 : vector<8x1xf32>
    %16 = math.rsqrt %15 : vector<8x1xf32>
    %17 = arith.mulf %16, %0 : vector<8x1xf32>
    %18 = vector.broadcast %17 : vector<8x1xf32> to vector<8x256xf32>
    %19 = arith.mulf %8, %18 : vector<8x256xf32>
    %20 = vector.broadcast %1 : vector<8x1xf32> to vector<8x256xf32>
    %21 = arith.addf %19, %20 : vector<8x256xf32>
    %c0_8 = arith.constant 0 : index
    %c0_9 = arith.constant 0 : index
    %22 = vector.load %arg3[%c0_8, %c0_9] : memref<8x256xf32, #tpu.memory_space<vmem>>, vector<8x256xf32>
    tpu.vector_store %arg3[%c0_8, %c0_9], %21 {strides = array<i32>} : memref<8x256xf32, #tpu.memory_space<vmem>>, vector<8x256xf32>,
    %c0_10 = arith.constant 0 : index
    %c0_11 = arith.constant 0 : index
    %23 = vector.load %arg4[%c0_10, %c0_11] : memref<8x2xf32, #tpu.memory_space<vmem>>, vector<8x1xf32>
    tpu.vector_store %arg4[%c0_10, %c0_11], %6 {strides = array<i32>} : memref<8x2xf32, #tpu.memory_space<vmem>>, vector<8x1xf32>,
    %c0_12 = arith.constant 0 : index
    %c1_13 = arith.constant 1 : index
    %24 = vector.load %arg4[%c0_12, %c1_13] : memref<8x2xf32, #tpu.memory_space<vmem>>, vector<8x1xf32>
    tpu.vector_store %arg4[%c0_12, %c1_13], %13 {strides = array<i32>} : memref<8x2xf32, #tpu.memory_space<vmem>>, vector<8x1xf32>,
    return
  }
  func.func @transform_0(%arg0: i32) -> (i32, i32) {
    %c0_i32 = arith.constant 0 : i32
    %c0_i32_0 = arith.constant 0 : i32
    return %arg0, %c0_i32 : i32, i32
  }
  func.func @transform_1(%arg0: i32) -> (i32, i32) {
    %c0_i32 = arith.constant 0 : i32
    %c0_i32_0 = arith.constant 0 : i32
    return %arg0, %c0_i32 : i32, i32
  }
  func.func @transform_2(%arg0: i32) -> (i32, i32) {
    %c0_i32 = arith.constant 0 : i32
    %c0_i32_0 = arith.constant 0 : i32
    return %arg0, %c0_i32 : i32, i32
  }
  func.func @transform_3(%arg0: i32) -> (i32, i32) {
    %c0_i32 = arith.constant 0 : i32
    %c0_i32_0 = arith.constant 0 : i32
    return %arg0, %c0_i32 : i32, i32
  }
}

</mosaic_0001>

<llo_original>
// kernel: tpu_custom_call.1
$region0: #{tpu_custom_call.1}
  #allocation0 [shape = 'u32[]', space=smem, size = 0x4, offset = 0x4, fixed_abs, tag = 'smem constant byte address 0x4 - core index']
  #allocation1 [shape = 'u32[144,128]{1,0:T(1,128)}', space=vmem, size = 0x12000, scoped, tag = 'internal scratch']
  %s0 = inlined_call_operand.hbm [shape: f32[8,256], index: 0, kind: input, shape index: {}]
  %s1 = inlined_call_operand.vmem [shape: f32[8,2], index: 1, kind: input, shape index: {}]
  %s2 = inlined_call_operand.hbm [shape: f32[8,256], index: 2, kind: output, shape index: {0}]
  %s3 = inlined_call_operand.vmem [shape: f32[8,2], index: 3, kind: output, shape index: {1}]
  %4 = xla_tuple %s2, %s3
  %s5 = sld [smem:[#allocation0]]
  $region30: #{tpu_custom_call.1} parent=0
    _
  %s7 = ssub.s32 1, %s5
  %s8 = scalar_select 0, %s7, %s5
  $region1: #{tpu_custom_call.1} parent=0
    #allocation2 [shape = 'u8[8192]{0}', space=vmem, size = 0x2000, scoped, tag = 'input window, operand 0, single buffered']
    #allocation3 [shape = 's32[1]{0}', space=sflag, size = 0x4, scoped, tag = 'scoped memory for tpu_custom_call.1']
    #allocation4 [shape = 's32[1]{0}', space=sflag, size = 0x4, scoped, tag = 'scoped memory for tpu_custom_call.1']
    #allocation5 [shape = 'u8[8192]{0}', space=vmem, size = 0x2000, scoped, tag = 'output window, operand 0, single buffered']
    %9 = vsyncpa [#allocation3], 0
    %10 = vsyncpa [#allocation4], 0
    // Predicated region
    $region2: #{tpu_custom_call.1} parent=1 // pred_check
      _
    $region3: #{tpu_custom_call.1} parent=1 // pred_check_branch
      %12 = sbr.rel (0) target = $region5
    $region4: #{tpu_custom_call.1} parent=1 // pred_region
      %s14 = ssub.s32 256, 256
      %15 = vsyncadd [#allocation3], %s14
      %s17 = sshll.u32 [#allocation2], 4
      %s18 = int_to_ptr.vmem [resolvable:$true] %s17
      %20 = dma.hbm_to_vmem [thread:$0]  %s0, 256, %s18, [#allocation3]
    $region5: #{tpu_custom_call.1} parent=1 // pred_fallthru
      _
    // Predicated region
    $region6: #{tpu_custom_call.1} parent=1 // pred_check
      _
    $region7: #{tpu_custom_call.1} parent=1 // pred_check_branch
      %22 = sbr.rel (0) target = $region9
    $region8: #{tpu_custom_call.1} parent=1 // pred_region
      _
    $region9: #{tpu_custom_call.1} parent=1 // pred_fallthru
      _
    // Predicated region
    $region10: #{tpu_custom_call.1} parent=1 // pred_check
      _
    $region11: #{tpu_custom_call.1} parent=1 // pred_check_branch
      %24 = sbr.rel (0) target = $region13
    $region12: #{tpu_custom_call.1} parent=1 // pred_region
      %25 = dma.done [#allocation3], 256
    $region13: #{tpu_custom_call.1} parent=1 // pred_fallthru
      _
    %v26 = vld [vmem:[%s1] sm:$0xff]
    %v27 = vld [vmem:[#allocation2] sm:$0xff]
    %v28 = vld [vmem:[#allocation2 + $0x8] sm:$0xff]
    %v29 = vadd.f32 %v27, %v28
    %30 = vadd.xlane.f32.xlu0 %v29
    %v31 = vpop.xlane.xlu0 %30
    %v32 = vrcp.pop 256.0
    %v33 = vmul.f32 %v31, %v32
    %v34 = vsub.f32 %v27, %v33
    %v35 = vsub.f32 %v28, %v33
    %v36 = vmul.f32 %v34, %v34
    %v37 = vmul.f32 %v35, %v35
    %v38 = vadd.f32 %v36, %v37
    %39 = vadd.xlane.f32.xlu0 %v38
    %v40 = vpop.xlane.xlu0 %39
    %v41 = vmul.f32 %v40, %v32
    %v42 = vadd.f32 %v41, 1e-05
    %v43 = vrsqrt.pop %v42
    %v44 = vmul.f32 %v43, %v26
    %46 = vset.pattern.permute.xlu0 0
    %47 = vperm.xlu0 %46, %v44
    %v48 = vpop.permute.xlu0 %47
    %v50 = vmul.f32 %v34, %v48
    %v51 = vmul.f32 %v35, %v48
    %53 = vset.pattern.permute.xlu0 1
    %54 = vperm.xlu0 %53, %v26
    %v55 = vpop.permute.xlu0 %54
    %v57 = vadd.f32 %v50, %v55
    %v58 = vadd.f32 %v51, %v55
    %59 = vst [vmem:[#allocation5] sm:$0xff] %v57
    %60 = vst [vmem:[#allocation5 + $0x8] sm:$0xff] %v58
    %vm61 = vcmask 7168
    %62 = vst.msk [vmem:[%s3] sm:$0xff] %vm61, %v33
    %vm63 = vcmask 15368
    %64 = vst.msk [vmem:[%s3] sm:$0xff] %vm63, %v41
    // Predicated region
    $region14: #{tpu_custom_call.1} parent=1 // pred_check
      _
    $region15: #{tpu_custom_call.1} parent=1 // pred_check_branch
      %66 = sbr.rel (0) target = $region17
    $region16: #{tpu_custom_call.1} parent=1 // pred_region
      %s68 = ssub.s32 256, 256
      %69 = vsyncadd [#allocation4], %s68
      %s71 = sshll.u32 [#allocation5], 4
      %s72 = int_to_ptr.vmem [resolvable:$true] %s71
      %74 = dma.vmem_to_hbm [thread:$0]  %s72, 256, %s2, [#allocation4]
    $region17: #{tpu_custom_call.1} parent=1 // pred_fallthru
      _
    // Predicated region
    $region18: #{tpu_custom_call.1} parent=1 // pred_check
      _
    $region19: #{tpu_custom_call.1} parent=1 // pred_check_branch
      %76 = sbr.rel (0) target = $region21
    $region20: #{tpu_custom_call.1} parent=1 // pred_region
      _
    $region21: #{tpu_custom_call.1} parent=1 // pred_fallthru
      _
    // Predicated region
    $region22: #{tpu_custom_call.1} parent=1 // pred_check
      _
    $region23: #{tpu_custom_call.1} parent=1 // pred_check_branch
      %78 = sbr.rel (0) target = $region25
    $region24: #{tpu_custom_call.1} parent=1 // pred_region
      %79 = dma.done [#allocation4], 256
    $region25: #{tpu_custom_call.1} parent=1 // pred_fallthru
      _
    // Predicated region
    $region26: #{tpu_custom_call.1} parent=1 // pred_check
      _
    $region27: #{tpu_custom_call.1} parent=1 // pred_check_branch
      %81 = sbr.rel (0) target = $region29
    $region28: #{tpu_custom_call.1} parent=1 // pred_region
      _
    $region29: #{tpu_custom_call.1} parent=1 // pred_fallthru
      _
    %82 = vsyncpa [#allocation3], 1
    %83 = vsyncpa [#allocation4], 1

</llo_original>
